<compile_context>
chip_gen: v7x
topology: tpu7x:2x2x1
jax: 0.10.0
libtpu: 0.0.40
codegen_flags: <defaults>
</compile_context>

<pallas_src>
import functools
import math

import jax
import jax.numpy as jnp
import numpy as np
from jax.experimental import pallas as pl
from jax.experimental.pallas import tpu as pltpu


# ---------------------------------------------------------------------------
# Small compatibility shims (all no-ops on current JAX).
# ---------------------------------------------------------------------------
_SQUEEZED = pl.Squeezed() if hasattr(pl, "Squeezed") else None

_MS = getattr(pltpu, "MemorySpace", None) or getattr(pltpu, "TPUMemorySpace", None)
_VMEM_SPACE = _MS.VMEM if _MS is not None else pltpu.VMEM


def _compiler_params(**kwargs):
    cls = (getattr(pltpu, "CompilerParams", None)
           or getattr(pltpu, "TPUCompilerParams", None))
    return cls(**kwargs) if cls is not None else None


def _vmem_capacity_bytes():
    try:
        return int(pltpu.get_tpu_info().vmem_capacity_bytes)
    except Exception:
        return 64 * 1024 * 1024          # conservative: v7x per-TensorCore VMEM


def _weight_tile_spec(block_shape, index_map, buffers):
    """Weight-tile BlockSpec, optionally with deeper pipelining (Buffered(n))."""
    if buffers is not None and hasattr(pl, "Buffered"):
        try:
            return pl.BlockSpec(block_shape, index_map,
                                pipeline_mode=pl.Buffered(buffers))
        except Exception:                 # older jax without pipeline_mode
            pass
    return pl.BlockSpec(block_shape, index_map)


# ---------------------------------------------------------------------------
# Hypercomplex component index matrix (signed, same convention as the torch
# module: comp_mat[j][i] is the signed component placed in row-block i of
# column-block j of the hamilton matrix; sign(0) is treated as +1).
# NOTE: get_comp_mat was not part of the provided source; standard complex /
# quaternion (Hamilton product) tables are used.  Pass comp_mat explicitly if
# the original table differs.
# ---------------------------------------------------------------------------
def get_comp_mat(n_divs=4):
    if n_divs == 1:
        return np.array([[0]], dtype=np.int32)
    if n_divs == 2:
        # hamilton = [[w0, -w1],
        #             [w1,  w0]]
        return np.array([[0, 1],
                         [-1, 0]], dtype=np.int32)
    if n_divs == 4:
        # hamilton = [[w0, -w1, -w2, -w3],
        #             [w1,  w0, -w3,  w2],
        #             [w2,  w3,  w0, -w1],
        #             [w3, -w2,  w1,  w0]]
        return np.array([[0, 1, 2, 3],
                         [-1, 0, 3, -2],
                         [-2, -3, 0, 1],
                         [-3, 2, -1, 0]], dtype=np.int32)
    # TODO(synk): generic Cayley-Dickson table for n_divs=8/16 if ever needed.
    raise NotImplementedError(f"get_comp_mat not defined for n_divs={n_divs}")


def hamilton_forward(weights, n_divs=4, comp_mat=None):
    """Faithful plain-JAX port of Hamilton.forward (reference / fallback).

    weights: (n_divs, out_div, in_div) -> hamilton: (n_divs*out_div, n_divs*in_div)
    """
    if comp_mat is None:
        comp_mat = get_comp_mat(n_divs)
    comp_mat = np.asarray(comp_mat)
    cols = []
    for comp_i in comp_mat:                       # column block j
        blocks = []
        for ii in comp_i:                         # row block i
            itr = int(abs(int(ii)))
            sgn = int(np.sign(ii)) if np.sign(ii) != 0 else 1
            blocks.append(sgn * weights[itr])
        cols.append(jnp.concatenate(blocks, axis=0))
    return jnp.concatenate(cols, axis=1)


def _signed_comp_tables(comp_mat, n_divs):
    comp_mat = np.asarray(comp_mat, dtype=np.int32)
    assert comp_mat.shape == (n_divs, n_divs)
    comp_idx = np.abs(comp_mat).reshape(-1).astype(np.int32)
    comp_sgn = np.sign(comp_mat).reshape(-1).astype(np.int32)
    comp_sgn[comp_sgn == 0] = 1
    return jnp.asarray(comp_idx), jnp.asarray(comp_sgn)


def _pick_tile(dim, prefs, min_tiles=1):
    for t in prefs:
        if t <= dim and dim % t == 0 and dim // t >= min_tiles:
            return t
    return None


# ---------------------------------------------------------------------------
# 1) Hamilton.forward proper as a Pallas kernel (weights -> hamilton matrix).
# ---------------------------------------------------------------------------
def _hamilton_build_kernel(comp_idx_ref, comp_sgn_ref, w_ref, o_ref, *, n_divs):
    del comp_idx_ref                       # consumed only in the weight index_map
    i = pl.program_id(0)                   # row (output) component block
    j = pl.program_id(1)                   # column (input) component block
    s = comp_sgn_ref[j * n_divs + i]

    @pl.when(s >= 0)
    def _copy():
        o_ref[...] = w_ref[...]

    @pl.when(s < 0)
    def _negate():
        o_ref[...] = -w_ref[...]


def hamilton_matrix(weights, n_divs=4, comp_mat=None):
    """Hamilton.forward as a Pallas kernel (gather / negate / concat on-chip)."""
    if comp_mat is None:
        comp_mat = get_comp_mat(n_divs)
    nd, out_div, in_div = weights.shape
    assert nd == n_divs
    # Ragged component blocks -> masked partial stores; let XLA handle the glue.
    if out_div % 8 != 0 or in_div % 128 != 0:
        return hamilton_forward(weights, n_divs, comp_mat)

    comp_idx, comp_sgn = _signed_comp_tables(comp_mat, n_divs)
    kernel = functools.partial(_hamilton_build_kernel, n_divs=n_divs)

    return pl.pallas_call(
        kernel,
        out_shape=jax.ShapeDtypeStruct((n_divs * out_div, n_divs * in_div),
                                       weights.dtype),
        grid_spec=pltpu.PrefetchScalarGridSpec(
            num_scalar_prefetch=2,
            grid=(n_divs, n_divs),
            in_specs=[
                pl.BlockSpec((_SQUEEZED, out_div, in_div),
                             lambda i, j, ci, cs: (ci[j * n_divs + i], 0, 0)),
            ],
            out_specs=pl.BlockSpec((out_div, in_div),
                                   lambda i, j, ci, cs: (i, j)),
        ),
        compiler_params=_compiler_params(
            dimension_semantics=("parallel", "parallel")),
    )(comp_idx, comp_sgn, weights)


# ---------------------------------------------------------------------------
# 2) Fused consumer: y = x @ hamilton(W)^T + bias, hamilton never built.
# ---------------------------------------------------------------------------
def _hamilton_linear_kernel(comp_idx_ref, comp_sgn_ref, *refs,
                            n_divs, npb, kpb, tk, tn,
                            has_bias, resident, compute_dtype):
    if has_bias:
        x_ref, wt_ref, b_ref, o_ref, acc_ref = refs
    else:
        x_ref, wt_ref, o_ref, acc_ref = refs
        b_ref = None

    n = pl.program_id(1)                   # output tile over out_features
    r = pl.program_id(2)                   # reduction tile over in_features
    i = n // npb                           # output component block
    j = r // kpb                           # input component block
    lin = j * n_divs + i

    # Bias folded into the accumulator init (one bias DMA per output tile, no
    # epilogue pass).  bias=None allocates no bias array at all.
    @pl.when(r == 0)
    def _init():
        if has_bias:
            acc_ref[...] = jnp.broadcast_to(b_ref[...], acc_ref.shape)
        else:
            acc_ref[...] = jnp.zeros_like(acc_ref)

    xv = x_ref[...]
    if xv.dtype != compute_dtype:          # trace-time: in-kernel cast path
        xv = xv.astype(compute_dtype)

    if resident:
        # Whole (n_divs, in_div, out_div) weight array is VMEM-resident (one
        # HBM->VMEM copy for the entire grid); slice the needed component tile.
        c = comp_idx_ref[lin]
        k0 = pl.multiple_of((r % kpb) * tk, tk)
        n0 = pl.multiple_of((n % npb) * tn, tn)
        wv = wt_ref[c, pl.ds(k0, tk), pl.ds(n0, tn)]
    else:
        # Streamed path: the component tile was DMA'd via the weight index_map.
        wv = wt_ref[...]

    # Sign as a scalar branch: keeps the canonical `acc += dot` form in each
    # arm (MRB accumulate on v7x) and removes the per-step (tm,tn) f32 VPU mul.
    s = comp_sgn_ref[lin]

    @pl.when(s >= 0)
    def _acc_pos():
        acc_ref[...] += jnp.dot(xv, wv, preferred_element_type=jnp.float32)

    @pl.when(s < 0)
    def _acc_neg():
        acc_ref[...] -= jnp.dot(xv, wv, preferred_element_type=jnp.float32)

    @pl.when(r == pl.num_programs(2) - 1)
    def _store():
        o_ref[...] = acc_ref[...].astype(o_ref.dtype)


def hamilton_linear(x, weights, bias=None, n_divs=4, comp_mat=None,
                    compute_dtype=jnp.bfloat16, allow_resident_weights=True,
                    min_batch_for_kernel=128):
    """y = x @ hamilton(weights).T (+ bias) without materializing hamilton.

    x       : (batch, in_features),      in_features  = n_divs * in_div
    weights : (n_divs, out_div, in_div), out_features = n_divs * out_div
    bias    : (out_features,) or None

    Precision: default bf16 MXU inputs + f32 accumulation (differs from a
    PyTorch f32 matmul only by bf16 input rounding).  Use
    compute_dtype=jnp.float32 for full f32 parity.
    """
    if comp_mat is None:
        comp_mat = get_comp_mat(n_divs)
    nd, out_div, in_div = weights.shape
    assert nd == n_divs
    batch, in_features = x.shape
    assert in_features == n_divs * in_div
    out_features = n_divs * out_div

    def _xla_fallback():
        h = hamilton_forward(weights, n_divs, comp_mat)
        y = jnp.dot(x.astype(compute_dtype), h.T.astype(compute_dtype),
                    preferred_element_type=jnp.float32)
        if bias is not None:
            y = y + bias
        return y.astype(x.dtype)

    # Tiny / ragged problems: XLA's fused dot wins (per-step overhead, masked
    # partial stores on non-(8,128) tiles).
    aligned = (batch >= min_batch_for_kernel and batch % 8 == 0
               and in_div % 128 == 0 and out_div % 128 == 0)
    if not aligned:
        return _xla_fallback()

    # --- generation-aware VMEM budget (v5e/v6e: 128 MiB, v7x: 64 MiB/TC) -----
    vmem_cap = _vmem_capacity_bytes()
    budget = int(0.70 * vmem_cap)
    resident_cap = min(vmem_cap // 4, 32 * 1024 * 1024)

    w_el = np.dtype(compute_dtype).itemsize
    o_el = np.dtype(x.dtype).itemsize
    wt_bytes = n_divs * in_div * out_div * w_el
    resident = bool(allow_resident_weights) and wt_bytes <= resident_cap

    # --- tile selection: as large as the budget allows; keep >=2 tiles on the
    # parallel M axis when possible so both v7x TensorCores get work ---------
    tm = _pick_tile(batch, (512, 256, 128, 64, 32, 16, 8),
                    min_tiles=2 if batch >= 256 else 1)
    tn = _pick_tile(out_div, (512, 256, 128))
    tk = _pick_tile(in_div, (1024, 512, 256, 128))
    if tm is None or tn is None or tk is None:
        return _xla_fallback()

    def _need(tm_, tn_, tk_):
        nbytes = 2 * tm_ * tk_ * 4             # x tiles (worst-case f32), 2-buf
        nbytes += 2 * tm_ * tn_ * o_el         # output tiles, 2-buf
        nbytes += tm_ * tn_ * 4                # f32 accumulator scratch
        nbytes += 2 * tn_ * 4                  # bias tile
        if resident:
            nbytes += wt_bytes                 # whole weight array, one copy
        else:
            nbytes += 3 * tk_ * tn_ * w_el     # weight tiles (up to Buffered(3))
        return nbytes

    while _need(tm, tn, tk) > budget and (tk > 128 or tn > 128):
        if tk > 128:
            tk //= 2
        else:
            tn //= 2

    npb = out_div // tn                        # N tiles per output comp block
    kpb = in_div // tk                         # K tiles per input comp block
    gm, gn, gr = batch // tm, out_features // tn, in_features // tk

    # --- operand prep ---------------------------------------------------------
    # TODO(synk): in a real model store the weights pre-transposed / pre-cast as
    # (n_divs, in_div, out_div) in compute_dtype so this per-call pass vanishes.
    wt = jnp.transpose(weights, (0, 2, 1))
    if wt.dtype != compute_dtype:
        wt = wt.astype(compute_dtype)
    # Wrapper-side x cast is an extra HBM pass; only worth it when the kernel
    # re-reads x >= ~4 times (once per N tile).  Otherwise cast the tile
    # in-kernel.
    if x.dtype != compute_dtype and gn >= 4:
        x_in = x.astype(compute_dtype)
    else:
        x_in = x

    comp_idx, comp_sgn = _signed_comp_tables(comp_mat, n_divs)

    # --- specs ----------------------------------------------------------------
    x_spec = pl.BlockSpec((tm, tk), lambda m, n, r, ci, cs: (m, r))
    o_spec = pl.BlockSpec((tm, tn), lambda m, n, r, ci, cs: (m, n))

    if resident:
        # Whole weight array pinned in VMEM for the entire grid: removes the
        # n_divs-times-redundant per-step weight DMA stream.
        w_spec = pl.BlockSpec(memory_space=_VMEM_SPACE)
    else:
        def w_map(m, n, r, ci, cs):
            # Component id for (input block j, output block i) comes from the
            # scalar-prefetched comp table -> hamilton never exists in HBM.
            return (ci[(r // kpb) * n_divs + (n // npb)], r % kpb, n % npb)
        buffers = 3 if _need(tm, tn, tk) + tk * tn * w_el <= budget else None
        w_spec = _weight_tile_spec((_SQUEEZED, tk, tn), w_map, buffers)

    in_specs = [x_spec, w_spec]
    operands = [comp_idx, comp_sgn, x_in, wt]
    has_bias = bias is not None
    if has_bias:
        in_specs.append(pl.BlockSpec((1, tn), lambda m, n, r, ci, cs: (0, n)))
        operands.append(bias.reshape(1, out_features).astype(jnp.float32))

    kernel = functools.partial(
        _hamilton_linear_kernel,
        n_divs=n_divs, npb=npb, kpb=kpb, tk=tk, tn=tn,
        has_bias=has_bias, resident=resident, compute_dtype=compute_dtype)

    vmem_limit = int(min(0.9 * vmem_cap,
                         max(32 * 1024 * 1024, 2 * _need(tm, tn, tk))))

    return pl.pallas_call(
        kernel,
        out_shape=jax.ShapeDtypeStruct((batch, out_features), x.dtype),
        grid_spec=pltpu.PrefetchScalarGridSpec(
            num_scalar_prefetch=2,
            grid=(gm, gn, gr),
            in_specs=in_specs,
            out_specs=o_spec,
            scratch_shapes=[pltpu.VMEM((tm, tn), jnp.float32)],
        ),
        compiler_params=_compiler_params(
            # M / N shard across TensorCores (v7x has 2); the reduction axis is
            # last and 'arbitrary' so the f32 accumulator stays resident.
            dimension_semantics=("parallel", "parallel", "arbitrary"),
            vmem_limit_bytes=vmem_limit,
        ),
    )(*operands)


# ---------------------------------------------------------------------------
if __name__ == "__main__":
    key = jax.random.PRNGKey(0)
    n_divs = 4
    in_features = out_features = 512            # in_div = out_div = 128
    batch = 256
    in_div, out_div = in_features // n_divs, out_features // n_divs

    # Deterministic parameter init (HyperLinear.reset_parameters-style bound).
    stdv = math.sqrt(6.0 / (out_div + in_div * n_divs))
    k_w, k_x, k_b = jax.random.split(key, 3)
    weights = jax.random.uniform(k_w, (n_divs, out_div, in_div),
                                 minval=-stdv, maxval=stdv, dtype=jnp.float32)
    bias = jax.random.uniform(k_b, (out_features,),
                              minval=-stdv, maxval=stdv, dtype=jnp.float32)
    x = jax.random.normal(k_x, (batch, in_features), dtype=jnp.float32)

    # 1) Hamilton.forward proper (weights -> hamilton matrix) as a Pallas
    #    kernel, checked exactly against the plain-JAX port of the torch code.
    h_pallas = jax.block_until_ready(hamilton_matrix(weights, n_divs))
    h_ref = jax.block_until_ready(hamilton_forward(weights, n_divs))
    assert h_pallas.shape == (out_features, in_features)
    np.testing.assert_array_equal(np.asarray(h_pallas), np.asarray(h_ref))

    # 2) Fused consumer, resident-weight path (weights ~128 KiB -> VMEM resident).
    y_res = jax.block_until_ready(hamilton_linear(x, weights, bias, n_divs=n_divs))
    # 3) Fused consumer, streaming (tiled-weight) path, no bias.
    y_str = jax.block_until_ready(
        hamilton_linear(x, weights, None, n_divs=n_divs,
                        allow_resident_weights=False))
    assert y_res.shape == (batch, out_features)
    assert y_str.shape == (batch, out_features)

    # Reference in float64 on host from the same bf16-rounded operands the
    # kernel feeds the MXU (only f32 accumulation-order noise remains).
    xr = np.asarray(x.astype(jnp.bfloat16).astype(jnp.float32), dtype=np.float64)
    hr = np.asarray(h_ref.astype(jnp.bfloat16).astype(jnp.float32), dtype=np.float64)
    y_ref = xr @ hr.T
    err_res = float(np.max(np.abs(np.asarray(y_res, np.float64)
                                  - (y_ref + np.asarray(bias, np.float64)))))
    err_str = float(np.max(np.abs(np.asarray(y_str, np.float64) - y_ref)))
    assert err_res < 2e-3, f"resident-weight path mismatch: max abs err {err_res}"
    assert err_str < 2e-3, f"tiled-weight path mismatch: max abs err {err_str}"

    print("KERNEL_OK")
</pallas_src>

<mosaic_0001>
module attributes {stable_mosaic.version = 11 : i64} {
  func.func @_hamilton_build_kernel(%arg0: i32, %arg1: i32, %arg2: memref<16xi32, #tpu.memory_space<smem>>, %arg3: memref<16xi32, #tpu.memory_space<smem>>, %arg4: memref<1x128x128xf32, #tpu.memory_space<vmem>>, %arg5: memref<128x128xf32, #tpu.memory_space<vmem>>) attributes {dimension_semantics = [#tpu.dimension_semantics<parallel>, #tpu.dimension_semantics<parallel>], iteration_bounds = array<i64: 4, 4>, scalar_prefetch = 2 : i64, scratch_operands = 0 : i64, tpu.core_type = #tpu.core_type<tc>, window_params = [{transform_indices = @transform_0, window_bounds = array<i64: 1, 128, 128>}, {transform_indices = @transform_1, window_bounds = array<i64: 128, 128>}]} {
    %c4_i32 = arith.constant 4 : i32
    %0 = arith.muli %arg1, %c4_i32 : i32
    %1 = arith.addi %0, %arg0 : i32
    %2 = arith.index_cast %1 : i32 to index
    %3 = memref.load %arg3[%2] : memref<16xi32, #tpu.memory_space<smem>>
    %c0_i32 = arith.constant 0 : i32
    %4 = arith.cmpi sge, %3, %c0_i32 : i32
    %5 = arith.extui %4 : i1 to i32
    %c0_i32_0 = arith.constant 0 : i32
    %6 = arith.cmpi ne, %5, %c0_i32_0 : i32
    scf.if %6 {
      %c0 = arith.constant 0 : index
      %c0_3 = arith.constant 0 : index
      %c0_4 = arith.constant 0 : index
      %10 = vector.load %arg4[%c0, %c0_3, %c0_4] : memref<1x128x128xf32, #tpu.memory_space<vmem>>, vector<1x128x128xf32>
      %11 = vector.shape_cast %10 : vector<1x128x128xf32> to vector<128x128xf32>
      %c0_5 = arith.constant 0 : index
      %c0_6 = arith.constant 0 : index
      %12 = vector.load %arg5[%c0_5, %c0_6] : memref<128x128xf32, #tpu.memory_space<vmem>>, vector<128x128xf32>
      tpu.vector_store %arg5[%c0_5, %c0_6], %11 {strides = array<i32>} : memref<128x128xf32, #tpu.memory_space<vmem>>, vector<128x128xf32>,
    } else {
    }
    %c0_i32_1 = arith.constant 0 : i32
    %7 = arith.cmpi slt, %3, %c0_i32_1 : i32
    %8 = arith.extui %7 : i1 to i32
    %c0_i32_2 = arith.constant 0 : i32
    %9 = arith.cmpi ne, %8, %c0_i32_2 : i32
    scf.if %9 {
      %c0 = arith.constant 0 : index
      %c0_3 = arith.constant 0 : index
      %c0_4 = arith.constant 0 : index
      %10 = vector.load %arg4[%c0, %c0_3, %c0_4] : memref<1x128x128xf32, #tpu.memory_space<vmem>>, vector<1x128x128xf32>
      %11 = vector.shape_cast %10 : vector<1x128x128xf32> to vector<128x128xf32>
      %cst = arith.constant 0.000000e+00 : f32
      %12 = vector.broadcast %cst : f32 to vector<128x128xf32>
      %13 = arith.subf %12, %11 : vector<128x128xf32>
      %c0_5 = arith.constant 0 : index
      %c0_6 = arith.constant 0 : index
      %14 = vector.load %arg5[%c0_5, %c0_6] : memref<128x128xf32, #tpu.memory_space<vmem>>, vector<128x128xf32>
      tpu.vector_store %arg5[%c0_5, %c0_6], %13 {strides = array<i32>} : memref<128x128xf32, #tpu.memory_space<vmem>>, vector<128x128xf32>,
    } else {
    }
    return
  }
  func.func @transform_0(%arg0: i32, %arg1: i32, %arg2: memref<16xi32, #tpu.memory_space<smem>>, %arg3: memref<16xi32, #tpu.memory_space<smem>>) -> (i32, i32, i32) {
    %c4_i32 = arith.constant 4 : i32
    %0 = arith.muli %arg1, %c4_i32 : i32
    %1 = arith.addi %0, %arg0 : i32
    %2 = arith.index_cast %1 : i32 to index
    %3 = memref.load %arg2[%2] : memref<16xi32, #tpu.memory_space<smem>>
    %c0_i32 = arith.constant 0 : i32
    %c0_i32_0 = arith.constant 0 : i32
    %c0_i32_1 = arith.constant 0 : i32
    return %3, %c0_i32, %c0_i32_0 : i32, i32, i32
  }
  func.func @transform_1(%arg0: i32, %arg1: i32, %arg2: memref<16xi32, #tpu.memory_space<smem>>, %arg3: memref<16xi32, #tpu.memory_space<smem>>) -> (i32, i32) {
    %c0_i32 = arith.constant 0 : i32
    return %arg0, %arg1 : i32, i32
  }
}

</mosaic_0001>

<llo_original>
// kernel: tpu_custom_call.1
$region0: #{tpu_custom_call.1}
  #allocation0 [shape = 'u32[]', space=smem, size = 0x4, offset = 0x4, fixed_abs, tag = 'smem constant byte address 0x4 - core index']
  #allocation1 [shape = 'u32[144,128]{1,0:T(1,128)}', space=vmem, size = 0x12000, scoped, tag = 'internal scratch']
  #allocation2 [shape = 's32[1]{0}', space=sflag, size = 0x4, scoped, tag = 'scoped memory for tpu_custom_call.1']
  #allocation3 [shape = 'u8[512]{0}', space=smem, size = 0x200, scoped, tag = 'prefetched SMEM operand 0']
  #allocation4 [shape = 'u8[512]{0}', space=smem, size = 0x200, scoped, tag = 'prefetched SMEM operand 1']
  %s0 = inlined_call_operand.hbm [shape: s32[16], index: 0, kind: input, shape index: {}]
  %s1 = inlined_call_operand.vmem [shape: s32[16], index: 1, kind: input, shape index: {}]
  %s2 = inlined_call_operand.hbm [shape: f32[4,128,128], index: 2, kind: input, shape index: {}]
  %s3 = inlined_call_operand.hbm [shape: f32[512,512], index: 3, kind: output, shape index: {}]
  %s4 = sld [smem:[#allocation0]]
  $region49: #{tpu_custom_call.1} parent=0
    _
  %s6 = ssub.s32 1, %s4
  %s7 = scalar_select 0, %s6, %s4
  %9 = dma.hbm_to_smem %s0, 16, [#allocation3], [#allocation2]
  %s10 = sshll.u32 %s1, 4
  %s11 = int_to_ptr.vmem [resolvable:$true] %s10
  %13 = dma.vmem_to_smem %s11, 16, [#allocation4], [#allocation2]
  %14 = dma.done [#allocation2], 32
  %15 = sfence
  $region1: #{tpu_custom_call.1} parent=0
    #allocation5 [shape = 'u8[131072]{0}', space=vmem, size = 0x20000, scoped, tag = 'input window, operand 2']
    #allocation6 [shape = 's32[2]{0}', space=sflag, size = 0x8, scoped, tag = 'scoped memory for tpu_custom_call.1']
    #allocation7 [shape = 's32[2]{0}', space=sflag, size = 0x8, scoped, tag = 'scoped memory for tpu_custom_call.1']
    #allocation8 [shape = 'u8[131072]{0}', space=vmem, size = 0x20000, scoped, tag = 'output window, operand 0']
    %16 = vsyncpa [#allocation6], 0
    %s17 = scalar_lea.sflag [#allocation6], 1
    %18 = vsyncpa %s17, 0
    %19 = vsyncpa [#allocation7], 0
    %s20 = scalar_lea.sflag [#allocation7], 1
    %21 = vsyncpa %s20, 0
    loop: start=0, step=1, limit=18
    $region2: #{tpu_custom_call.1} parent=1 // loop_pre_header
      _
    $region3: #{tpu_custom_call.1} parent=1 // loop_header
      %s23 = sphi 0, %s27
      %p24 = scmp.ge.s32.totalorder %s23, 18
      %s30 = sphi 0, %s42
      %s31 = sphi 0, %s38
      %s32 = sphi 0, %s30
      %s33 = sphi 0, %s31
      %s34 = sphi 0, %s32
      %s35 = sphi 0, %s33
      %s51 = sphi 0, %s53
      %s54 = sphi 0, %s51
      %s55 = sphi 0, %s54
      %s71 = sphi 0, %s55
      %s79 = sphi 0, %s81
      %s82 = sphi 0, %s79
      %s83 = sphi 0, %s82
      %s99 = sphi 0, %s83
    $region4: #{tpu_custom_call.1} parent=1 // loop_header_branch
      %26 = sbr.rel (%p24) target = $region8
    $region5: #{tpu_custom_call.1} parent=1 // loop_body
      %s28 = ssub.s32 %s23, 1
      %s29 = ssub.s32 %s23, 2
      %s36 = sadd.s32 1, %s31
      %p37 = scmp.ge.s32.totalorder %s36, 4
      %s38 = scalar_select %p37, 0, %s36
      %s39 = sadd.s32 1, %s30
      %s40 = scalar_select %p37, %s39, %s30
      %p41 = scmp.ge.s32.totalorder %s40, 4
      %s42 = scalar_select %p41, 0, %s40
      %s43 = smul.u32 %s31, 4
      %s44 = sadd.s32 %s43, %s30
      %s45 = sld [smem:[#allocation3 + %s44]]
      %s46 = smul.u32 %s38, 4
      %s47 = sadd.s32 %s46, %s42
      %s48 = sld [smem:[#allocation3 + %s47]]
      %s49 = ssub.s32 %s45, %s48
      %p50 = scmp.eq.s32.totalorder %s49, 0
      %s52 = sadd.s32 %s51, 1
      %s53 = scalar_select %p50, %s51, %s52
      %p56 = pneg %p50
      %p57 = scmp.eq.s32.totalorder %s23, 15
      %p58 = por %p56, %p57
      %p59 = scmp.ne.s32.totalorder %s51, %s54
      %p60 = scmp.eq.s32.totalorder %s23, 0
      %p61 = por %p59, %p60
      %p62 = scmp.ne.s32.totalorder %s51, %s54
      %p63 = scmp.eq.s32.totalorder %s28, 15
      %p64 = por %p62, %p63
      %p65 = scmp.ne.s32.totalorder %s54, %s55
      %p66 = scmp.eq.s32.totalorder %s28, 0
      %p67 = por %p65, %p66
      %p68 = scmp.ne.s32.totalorder %s54, %s55
      %p69 = scmp.eq.s32.totalorder %s29, 15
      %p70 = por %p68, %p69
      %p72 = scmp.ne.s32.totalorder %s55, %s71
      %p73 = scmp.eq.s32.totalorder %s29, 0
      %p74 = por %p72, %p73
      %s75 = ssub.s32 %s30, %s42
      %s76 = ssub.s32 %s31, %s38
      %s77 = sor.u32 %s75, %s76
      %p78 = scmp.eq.s32.totalorder %s77, 0
      %s80 = sadd.s32 %s79, 1
      %s81 = scalar_select %p78, %s79, %s80
      %p84 = pneg %p78
      %p85 = scmp.eq.s32.totalorder %s23, 15
      %p86 = por %p84, %p85
      %p87 = scmp.ne.s32.totalorder %s79, %s82
      %p88 = scmp.eq.s32.totalorder %s23, 0
      %p89 = por %p87, %p88
      %p90 = scmp.ne.s32.totalorder %s79, %s82
      %p91 = scmp.eq.s32.totalorder %s28, 15
      %p92 = por %p90, %p91
      %p93 = scmp.ne.s32.totalorder %s82, %s83
      %p94 = scmp.eq.s32.totalorder %s28, 0
      %p95 = por %p93, %p94
      %p96 = scmp.ne.s32.totalorder %s82, %s83
      %p97 = scmp.eq.s32.totalorder %s29, 15
      %p98 = por %p96, %p97
      %p100 = scmp.ne.s32.totalorder %s83, %s99
      %p101 = scmp.eq.s32.totalorder %s29, 0
      %p102 = por %p100, %p101
      %p103 = scmp.le.s32.totalorder 1, %s23
      %p104 = scmp.lt.s32.totalorder %s23, 17
      %p105 = pnand %p103, %p104
      %p106 = pneg %p105
      // Predicated region
      $region9: #{tpu_custom_call.1} parent=5 // pred_check
        _
      $region10: #{tpu_custom_call.1} parent=5 // pred_check_branch
        %108 = sbr.rel (%p105) target = $region12
      $region11: #{tpu_custom_call.1} parent=5 // pred_region
        %s109 = ssub.s32 %s23, 1
      $region12: #{tpu_custom_call.1} parent=5 // pred_fallthru
        _
      %p110 = scmp.lt.s32.totalorder %s23, 16
      // Predicated region
      $region13: #{tpu_custom_call.1} parent=5 // pred_check
        %p111 = pneg %p110
      $region14: #{tpu_custom_call.1} parent=5 // pred_check_branch
        %113 = sbr.rel (%p111) target = $region16
      $region15: #{tpu_custom_call.1} parent=5 // pred_region
        // Predicated region
        $region17: #{tpu_custom_call.1} parent=15 // pred_check
          %p114 = pneg %p61
        $region18: #{tpu_custom_call.1} parent=15 // pred_check_branch
          %116 = sbr.rel (%p114) target = $region20
        $region19: #{tpu_custom_call.1} parent=15 // pred_region
          %s117 = sand.u32 %s51, 1
          %s118 = scalar_lea.sflag [#allocation6], %s117
          %s119 = sand.u32 %s51, 1
          %s120 = smul.addr %s119, 128
          %s121 = scalar_lea.vmem [#allocation5], %s120
          %s122 = smul.u32 %s31, 4
          %s123 = sadd.s32 %s122, %s30
          %s124 = sld [smem:[#allocation3 + %s123]]
          %s126 = ssub.s32 2048, 2048
          %127 = vsyncadd %s118, %s126
          %s128 = smul.addr %s124, 16
          %s129 = smul.addr %s128, 128
          %s130 = scalar_lea.hbm %s2, %s129
          %s131 = sshll.u32 %s121, 4
          %s132 = int_to_ptr.vmem [resolvable:$true] %s131
          %137 = dma.hbm_to_vmem [thread:$0]  %s130, 2048, %s132, %s118, 128, 128, 8
        $region20: #{tpu_custom_call.1} parent=15 // pred_fallthru
          _
      $region16: #{tpu_custom_call.1} parent=5 // pred_fallthru
        _
      %p138 = scmp.le.s32.totalorder 1, %s23
      %p139 = scmp.lt.s32.totalorder %s23, 17
      %p140 = pnand %p138, %p139
      %p141 = pneg %p140
      // Predicated region
      $region21: #{tpu_custom_call.1} parent=5 // pred_check
        _
      $region22: #{tpu_custom_call.1} parent=5 // pred_check_branch
        %143 = sbr.rel (%p140) target = $region24
      $region23: #{tpu_custom_call.1} parent=5 // pred_region
        %s144 = ssub.s32 %s23, 1
        %s145 = sand.u32 %s54, 1
        %s146 = scalar_lea.sflag [#allocation6], %s145
        %s147 = sand.u32 %s54, 1
        %s148 = smul.addr %s147, 128
        %s149 = scalar_lea.vmem [#allocation5], %s148
        // Predicated region
        $region25: #{tpu_custom_call.1} parent=23 // pred_check
          %p150 = pneg %p67
        $region26: #{tpu_custom_call.1} parent=23 // pred_check_branch
          %152 = sbr.rel (%p150) target = $region28
        $region27: #{tpu_custom_call.1} parent=23 // pred_region
          %153 = dma.done %s146, 2048
        $region28: #{tpu_custom_call.1} parent=23 // pred_fallthru
          _
        %s154 = sand.u32 %s54, 1
        %s155 = scalar_lea.sflag [#allocation6], %s154
        %s156 = sand.u32 %s54, 1
        %s157 = smul.addr %s156, 128
        %s158 = scalar_lea.vmem [#allocation5], %s157
        %p159 = pneg %p67
        %p160 = pneg %p64
        %p161 = pneg %p95
        %p162 = pneg %p92
        %s163 = sand.u32 %s82, 1
        %s164 = scalar_lea.sflag [#allocation7], %s163
        %s165 = sand.u32 %s82, 1
        %s166 = smul.addr %s165, 128
        %s167 = scalar_lea.vmem [#allocation8], %s166
        %s168 = smul.u32 %s33, 4
        %s169 = sadd.s32 %s168, %s32
        %s170 = sld [smem:[#allocation3 + %s169]]
        %s171 = smul.u32 16, %s32
        %s172 = smul.u32 %s33, 4
        %s173 = sadd.s32 %s172, %s32
        %s174 = sld [smem:[#allocation4 + %s173]]
        %p175 = scmp.ge.s32.totalorder %s174, 0
        // Predicated region
        $region29: #{tpu_custom_call.1} parent=23 // pred_check
          %p176 = pneg %p175
        $region30: #{tpu_custom_call.1} parent=23 // pred_check_branch
          %178 = sbr.rel (%p176) target = $region32
        $region31: #{tpu_custom_call.1} parent=23 // pred_region
          %v179 = vld [vmem:[%s149] sm:$0xff]
          %v180 = vld [vmem:[%s149 + $0x8] sm:$0xff]
          %v181 = vld [vmem:[%s149 + $0x10] sm:$0xff]
          %v182 = vld [vmem:[%s149 + $0x18] sm:$0xff]
          %v183 = vld [vmem:[%s149 + $0x20] sm:$0xff]
          %v184 = vld [vmem:[%s149 + $0x28] sm:$0xff]
          %v185 = vld [vmem:[%s149 + $0x30] sm:$0xff]
          %v186 = vld [vmem:[%s149 + $0x38] sm:$0xff]
          %v187 = vld [vmem:[%s149 + $0x40] sm:$0xff]
          %v188 = vld [vmem:[%s149 + $0x48] sm:$0xff]
          %v189 = vld [vmem:[%s149 + $0x50] sm:$0xff]
          %v190 = vld [vmem:[%s149 + $0x58] sm:$0xff]
          %v191 = vld [vmem:[%s149 + $0x60] sm:$0xff]
          %v192 = vld [vmem:[%s149 + $0x68] sm:$0xff]
          %v193 = vld [vmem:[%s149 + $0x70] sm:$0xff]
          %v194 = vld [vmem:[%s149 + $0x78] sm:$0xff]
          %195 = vst [vmem:[%s167] sm:$0xff] %v179
          %196 = vst [vmem:[%s167 + $0x8] sm:$0xff] %v180
          %197 = vst [vmem:[%s167 + $0x10] sm:$0xff] %v181
          %198 = vst [vmem:[%s167 + $0x18] sm:$0xff] %v182
          %199 = vst [vmem:[%s167 + $0x20] sm:$0xff] %v183
          %200 = vst [vmem:[%s167 + $0x28] sm:$0xff] %v184
          %201 = vst [vmem:[%s167 + $0x30] sm:$0xff] %v185
          %202 = vst [vmem:[%s167 + $0x38] sm:$0xff] %v186
          %203 = vst [vmem:[%s167 + $0x40] sm:$0xff] %v187
          %204 = vst [vmem:[%s167 + $0x48] sm:$0xff] %v188
          %205 = vst [vmem:[%s167 + $0x50] sm:$0xff] %v189
          %206 = vst [vmem:[%s167 + $0x58] sm:$0xff] %v190
          %207 = vst [vmem:[%s167 + $0x60] sm:$0xff] %v191
          %208 = vst [vmem:[%s167 + $0x68] sm:$0xff] %v192
          %209 = vst [vmem:[%s167 + $0x70] sm:$0xff] %v193
          %210 = vst [vmem:[%s167 + $0x78] sm:$0xff] %v194
        $region32: #{tpu_custom_call.1} parent=23 // pred_fallthru
          _
        %p211 = scmp.lt.s32.totalorder %s174, 0
        // Predicated region
        $region33: #{tpu_custom_call.1} parent=23 // pred_check
          %p212 = pneg %p211
        $region34: #{tpu_custom_call.1} parent=23 // pred_check_branch
          %214 = sbr.rel (%p212) target = $region36
        $region35: #{tpu_custom_call.1} parent=23 // pred_region
          %v215 = vld [vmem:[%s149] sm:$0xff]
          %v216 = vld [vmem:[%s149 + $0x8] sm:$0xff]
          %v217 = vld [vmem:[%s149 + $0x10] sm:$0xff]
          %v218 = vld [vmem:[%s149 + $0x18] sm:$0xff]
          %v219 = vld [vmem:[%s149 + $0x20] sm:$0xff]
          %v220 = vld [vmem:[%s149 + $0x28] sm:$0xff]
          %v221 = vld [vmem:[%s149 + $0x30] sm:$0xff]
          %v222 = vld [vmem:[%s149 + $0x38] sm:$0xff]
          %v223 = vld [vmem:[%s149 + $0x40] sm:$0xff]
          %v224 = vld [vmem:[%s149 + $0x48] sm:$0xff]
          %v225 = vld [vmem:[%s149 + $0x50] sm:$0xff]
          %v226 = vld [vmem:[%s149 + $0x58] sm:$0xff]
          %v227 = vld [vmem:[%s149 + $0x60] sm:$0xff]
          %v228 = vld [vmem:[%s149 + $0x68] sm:$0xff]
          %v229 = vld [vmem:[%s149 + $0x70] sm:$0xff]
          %v230 = vld [vmem:[%s149 + $0x78] sm:$0xff]
          %v231 = vsub.f32 0.0, %v215
          %v232 = vsub.f32 0.0, %v216
          %v233 = vsub.f32 0.0, %v217
          %v234 = vsub.f32 0.0, %v218
          %v235 = vsub.f32 0.0, %v219
          %v236 = vsub.f32 0.0, %v220
          %v237 = vsub.f32 0.0, %v221
          %v238 = vsub.f32 0.0, %v222
          %v239 = vsub.f32 0.0, %v223
          %v240 = vsub.f32 0.0, %v224
          %v241 = vsub.f32 0.0, %v225
          %v242 = vsub.f32 0.0, %v226
          %v243 = vsub.f32 0.0, %v227
          %v244 = vsub.f32 0.0, %v228
          %v245 = vsub.f32 0.0, %v229
          %v246 = vsub.f32 0.0, %v230
          %247 = vst [vmem:[%s167] sm:$0xff] %v231
          %248 = vst [vmem:[%s167 + $0x8] sm:$0xff] %v232
          %249 = vst [vmem:[%s167 + $0x10] sm:$0xff] %v233
          %250 = vst [vmem:[%s167 + $0x18] sm:$0xff] %v234
          %251 = vst [vmem:[%s167 + $0x20] sm:$0xff] %v235
          %252 = vst [vmem:[%s167 + $0x28] sm:$0xff] %v236
          %253 = vst [vmem:[%s167 + $0x30] sm:$0xff] %v237
          %254 = vst [vmem:[%s167 + $0x38] sm:$0xff] %v238
          %255 = vst [vmem:[%s167 + $0x40] sm:$0xff] %v239
          %256 = vst [vmem:[%s167 + $0x48] sm:$0xff] %v240
          %257 = vst [vmem:[%s167 + $0x50] sm:$0xff] %v241
          %258 = vst [vmem:[%s167 + $0x58] sm:$0xff] %v242
          %259 = vst [vmem:[%s167 + $0x60] sm:$0xff] %v243
          %260 = vst [vmem:[%s167 + $0x68] sm:$0xff] %v244
          %261 = vst [vmem:[%s167 + $0x70] sm:$0xff] %v245
          %262 = vst [vmem:[%s167 + $0x78] sm:$0xff] %v246
        $region36: #{tpu_custom_call.1} parent=23 // pred_fallthru
          _
        %s263 = sand.u32 %s82, 1
        %s264 = scalar_lea.sflag [#allocation7], %s263
        %s265 = sand.u32 %s82, 1
        %s266 = smul.addr %s265, 128
        %s267 = scalar_lea.vmem [#allocation8], %s266
        // Predicated region
        $region37: #{tpu_custom_call.1} parent=23 // pred_check
          %p268 = pneg %p92
        $region38: #{tpu_custom_call.1} parent=23 // pred_check_branch
          %270 = sbr.rel (%p268) target = $region40
        $region39: #{tpu_custom_call.1} parent=23 // pred_region
          %s271 = smul.u32 16, %s32
          %s273 = ssub.s32 2048, 2048
          %274 = vsyncadd %s264, %s273
          %s275 = smul.addr %s271, 4
          %s276 = sadd.s32 %s33, %s275
          %s277 = smul.addr %s276, 128
          %s278 = scalar_lea.hbm %s3, %s277
          %s279 = sshll.u32 %s267, 4
          %s280 = int_to_ptr.vmem [resolvable:$true] %s279
          %285 = dma.vmem_to_hbm [thread:$0]  %s280, 2048, %s278, %s264, 128, 512, 8
        $region40: #{tpu_custom_call.1} parent=23 // pred_fallthru
          _
      $region24: #{tpu_custom_call.1} parent=5 // pred_fallthru
        _
      %p286 = scmp.le.s32.totalorder 2, %s23
      // Predicated region
      $region41: #{tpu_custom_call.1} parent=5 // pred_check
        %p287 = pneg %p286
      $region42: #{tpu_custom_call.1} parent=5 // pred_check_branch
        %289 = sbr.rel (%p287) target = $region44
      $region43: #{tpu_custom_call.1} parent=5 // pred_region
        %s290 = ssub.s32 %s23, 2
        // Predicated region
        $region45: #{tpu_custom_call.1} parent=43 // pred_check
          %p291 = pneg %p98
        $region46: #{tpu_custom_call.1} parent=43 // pred_check_branch
          %293 = sbr.rel (%p291) target = $region48
        $region47: #{tpu_custom_call.1} parent=43 // pred_region
          %s294 = sand.u32 %s83, 1
          %s295 = scalar_lea.sflag [#allocation7], %s294
          %s296 = sand.u32 %s83, 1
          %s297 = smul.addr %s296, 128
          %s298 = scalar_lea.vmem [#allocation8], %s297
          %299 = dma.done %s295, 2048
        $region48: #{tpu_custom_call.1} parent=43 // pred_fallthru
          _
      $region44: #{tpu_custom_call.1} parent=5 // pred_fallthru
        _
    $region6: #{tpu_custom_call.1} parent=1 // loop_footer
      %s27 = sadd.s32 1, %s23
    $region7: #{tpu_custom_call.1} parent=1 // loop_footer_branch
      %22 = sbr.rel target = $region3
    $region8: #{tpu_custom_call.1} parent=1 // loop_exit
      _
    %300 = vsyncpa [#allocation6], 1
    %s301 = scalar_lea.sflag [#allocation6], 1
    %302 = vsyncpa %s301, 1
    %303 = vsyncpa [#allocation7], 1
    %s304 = scalar_lea.sflag [#allocation7], 1
    %305 = vsyncpa %s304, 1

</llo_original>
